<compile_context>
chip_gen: v5e
topology: v5e:2x2
jax: 0.10.0
libtpu: 0.0.40
codegen_flags: <defaults>
</compile_context>

<pallas_src>
import functools

import jax
import jax.numpy as jnp
from jax.experimental import pallas as pl
from jax.experimental.pallas import tpu as pltpu

_BN_EPS = 1e-5
_LANE = 128
# Whole-problem-in-VMEM (gridless fused) path is used when the operands fit
# comfortably below this budget (conservative for all of v5e/v6e/v7x).
_FUSED_BUDGET_BYTES = 20 * 1024 * 1024
# Budget for the double-buffered x/out streams of the gridded path, sized
# against v7x's 64 MiB physical VMEM (smallest of v5e/v6e/v7x) with headroom
# for resident weights + compiler scratch.
_TILE_BUDGET_BYTES = 24 * 1024 * 1024
_GRIDDED_VMEM_LIMIT = 48 * 1024 * 1024


def _round_up(x, m):
    return ((x + m - 1) // m) * m


def _pad_cols(a, width):
    pad = width - a.shape[-1]
    return a if pad == 0 else jnp.pad(a, ((0, 0), (0, pad)))


# -----------------------------------------------------------------------------
# Kernels
# -----------------------------------------------------------------------------
def _fused_kernel(x_ref, w1_ref, vecs_ref, w2_ref, o_ref, *, n_valid):
    """Gridless fused forward: matmul -> BN(batch stats) -> clamp -> matmul -> clamp.

    x_ref    : (N, src)        f32
    w1_ref   : (src, src)      bf16
    vecs_ref : (3, W)          f32   rows = [gamma, beta, b2_padded]
    w2_ref   : (src, tgt_pad)  bf16  (zero-padded, lane-dense output)
    o_ref    : (N, tgt_pad)    f32
    """
    src = w1_ref.shape[0]
    tgt_pad = w2_ref.shape[1]

    # Linear #1 on the MXU (bf16 operands, f32 accumulation). b1 omitted:
    # it is cancelled by the training-mode BN mean subtraction.
    h = jnp.dot(x_ref[...].astype(jnp.bfloat16), w1_ref[...],
                preferred_element_type=jnp.float32)

    # One-pass batch statistics + BN folded into a per-feature affine.
    inv_n = 1.0 / n_valid
    mean = jnp.sum(h, axis=0, keepdims=True) * inv_n
    var = jnp.sum(h * h, axis=0, keepdims=True) * inv_n - mean * mean
    gamma = vecs_ref[0:1, :src]
    beta = vecs_ref[1:2, :src]
    scale = gamma * jax.lax.rsqrt(var + _BN_EPS)
    shift = beta - mean * scale

    # Hardtanh (f32 clamp: keeps the elementwise path v5e-safe).
    h_act = jnp.clip(h * scale + shift, -1.0, 1.0)

    # Linear #2, lane-dense store (tgt padded to a multiple of 128).
    b2 = vecs_ref[2:3, :tgt_pad]
    out = jnp.dot(h_act.astype(jnp.bfloat16), w2_ref[...],
                  preferred_element_type=jnp.float32) + b2
    o_ref[...] = jnp.clip(out, -1.0, 1.0).astype(o_ref.dtype)


def _stats_kernel(x_ref, w1_ref, stats_ref):
    """Pass 1 of the batch-gridded path: accumulate per-feature sum / sumsq of
    h = x @ W1 across batch tiles into a VMEM-resident (2, src) output."""
    @pl.when(pl.program_id(0) == 0)
    def _init():
        stats_ref[...] = jnp.zeros_like(stats_ref)

    h = jnp.dot(x_ref[...].astype(jnp.bfloat16), w1_ref[...],
                preferred_element_type=jnp.float32)
    stats_ref[0:1, :] += jnp.sum(h, axis=0, keepdims=True)
    stats_ref[1:2, :] += jnp.sum(h * h, axis=0, keepdims=True)


def _apply_kernel(x_ref, w1_ref, stats_ref, vecs_ref, w2_ref, o_ref, *, n_valid):
    """Pass 2 of the batch-gridded path: recompute x @ W1 per batch tile and
    finish the forward with the full-batch statistics from pass 1."""
    src = w1_ref.shape[0]
    tgt_pad = w2_ref.shape[1]

    h = jnp.dot(x_ref[...].astype(jnp.bfloat16), w1_ref[...],
                preferred_element_type=jnp.float32)

    inv_n = 1.0 / n_valid
    mean = stats_ref[0:1, :] * inv_n
    var = stats_ref[1:2, :] * inv_n - mean * mean
    gamma = vecs_ref[0:1, :src]
    beta = vecs_ref[1:2, :src]
    scale = gamma * jax.lax.rsqrt(var + _BN_EPS)
    shift = beta - mean * scale

    h_act = jnp.clip(h * scale + shift, -1.0, 1.0)

    b2 = vecs_ref[2:3, :tgt_pad]
    out = jnp.dot(h_act.astype(jnp.bfloat16), w2_ref[...],
                  preferred_element_type=jnp.float32) + b2
    o_ref[...] = jnp.clip(out, -1.0, 1.0).astype(o_ref.dtype)


# -----------------------------------------------------------------------------
# One-time parameter preprocessing (hoisted out of the per-call path)
# -----------------------------------------------------------------------------
def prepare_params(w1, b1, gamma, beta, w2, b2):
    """Convert raw module parameters to kernel-ready form, once.

    Returns ({'w1', 'vecs', 'w2'}, tgt). b1 is dropped: it is exactly
    cancelled by training-mode BatchNorm's mean subtraction.
    """
    del b1  # mathematically a no-op before training-mode BN
    src = w1.shape[0]
    tgt = w2.shape[1]
    tgt_pad = _round_up(tgt, _LANE)
    vec_w = max(src, tgt_pad)

    w1_bf = jnp.asarray(w1, jnp.bfloat16)
    w2_bf = _pad_cols(jnp.asarray(w2, jnp.float32), tgt_pad).astype(jnp.bfloat16)
    vecs = jnp.concatenate(
        [_pad_cols(jnp.asarray(gamma, jnp.float32).reshape(1, src), vec_w),
         _pad_cols(jnp.asarray(beta, jnp.float32).reshape(1, src), vec_w),
         _pad_cols(jnp.asarray(b2, jnp.float32).reshape(1, tgt), vec_w)],
        axis=0)
    return {"w1": w1_bf, "vecs": vecs, "w2": w2_bf}, tgt


# -----------------------------------------------------------------------------
# Forward
# -----------------------------------------------------------------------------
@functools.partial(jax.jit, static_argnames=("use_grid", "batch_tile"))
def _forward_padded_impl(x, w1, vecs, w2, *, use_grid, batch_tile):
    n, src = x.shape
    tgt_pad = w2.shape[1]
    vec_w = vecs.shape[1]

    if not use_grid:
        # ---- Gridless fused path: everything resident in VMEM. ----
        flops = 2 * n * src * (src + tgt_pad)
        bytes_accessed = (n * src * 4 + src * src * 2 + 3 * vec_w * 4
                          + src * tgt_pad * 2 + n * tgt_pad * 4)
        vmem = pl.BlockSpec(memory_space=pltpu.MemorySpace.VMEM)
        return pl.pallas_call(
            functools.partial(_fused_kernel, n_valid=n),
            out_shape=jax.ShapeDtypeStruct((n, tgt_pad), jnp.float32),
            in_specs=[vmem] * 4,
            out_specs=vmem,
            compiler_params=pltpu.CompilerParams(
                vmem_limit_bytes=32 * 1024 * 1024),
            cost_estimate=pl.CostEstimate(
                flops=flops, transcendentals=src,
                bytes_accessed=bytes_accessed),
        )(x, w1, vecs, w2)

    # ---- Batch-gridded two-pass BN path. ----
    tn = batch_tile
    n_pad = _round_up(n, tn)
    if n_pad != n:
        # Zero rows contribute exactly 0 to both BN sums (no bias before BN),
        # so batch padding is statistics-neutral; we divide by the true n.
        x = jnp.pad(x, ((0, n_pad - n), (0, 0)))
    grid = (n_pad // tn,)

    # Pass 1: per-feature sum / sumsq accumulated across batch tiles.
    stats = pl.pallas_call(
        _stats_kernel,
        out_shape=jax.ShapeDtypeStruct((2, src), jnp.float32),
        grid_spec=pltpu.PrefetchScalarGridSpec(
            num_scalar_prefetch=0,
            grid=grid,
            in_specs=[pl.BlockSpec((tn, src), lambda i: (i, 0)),
                      pl.BlockSpec((src, src), lambda i: (0, 0))],
            out_specs=pl.BlockSpec((2, src), lambda i: (0, 0))),
        compiler_params=pltpu.CompilerParams(
            dimension_semantics=("arbitrary",),
            vmem_limit_bytes=_GRIDDED_VMEM_LIMIT),
        cost_estimate=pl.CostEstimate(
            flops=2 * n_pad * src * src, transcendentals=0,
            bytes_accessed=n_pad * src * 4 + src * src * 2 + 2 * src * 4),
    )(x, w1)

    # Pass 2: recompute x@W1 per tile, apply folded BN + clamps + second matmul.
    out_padded = pl.pallas_call(
        functools.partial(_apply_kernel, n_valid=n),
        out_shape=jax.ShapeDtypeStruct((n_pad, tgt_pad), jnp.float32),
        grid_spec=pltpu.PrefetchScalarGridSpec(
            num_scalar_prefetch=0,
            grid=grid,
            in_specs=[pl.BlockSpec((tn, src), lambda i: (i, 0)),
                      pl.BlockSpec((src, src), lambda i: (0, 0)),
                      pl.BlockSpec((2, src), lambda i: (0, 0)),
                      pl.BlockSpec((3, vec_w), lambda i: (0, 0)),
                      pl.BlockSpec((src, tgt_pad), lambda i: (0, 0))],
            out_specs=pl.BlockSpec((tn, tgt_pad), lambda i: (i, 0))),
        compiler_params=pltpu.CompilerParams(
            dimension_semantics=("parallel",),
            vmem_limit_bytes=_GRIDDED_VMEM_LIMIT),
        cost_estimate=pl.CostEstimate(
            flops=2 * n_pad * src * (src + tgt_pad),
            transcendentals=grid[0] * src,
            bytes_accessed=(n_pad * src * 4 + src * src * 2
                            + src * tgt_pad * 2 + n_pad * tgt_pad * 4)),
    )(x, w1, stats, vecs, w2)
    return out_padded


def _choose_batch_tile(n, src, tgt_pad):
    """Largest batch tile whose double-buffered x/out streams fit the budget."""
    row_bytes = (src + tgt_pad) * 4
    tn = 8
    for cand in (1024, 512, 256, 128, 64, 32, 16, 8):
        if 2 * cand * row_bytes <= _TILE_BUDGET_BYTES:
            tn = cand
            break
    return min(tn, _round_up(n, 8))


def style_agnostic_forward_padded(x, params, *, batch_tile=None, force_grid=False):
    """Forward pass returning the lane-dense padded output slab.

    Shape (n_pad, tgt_pad) where tgt_pad = round_up(tgt, 128) and n_pad >= n
    only on the gridded path. The consumer slices [:n, :tgt] (done lazily by
    the caller to avoid an extra HBM round-trip per call).
    """
    n, src = x.shape
    tgt_pad = params["w2"].shape[1]
    fused_bytes = (3 * n * src * 4 + 2 * n * tgt_pad * 4
                   + src * src * 2 + src * tgt_pad * 2)
    use_grid = bool(force_grid) or fused_bytes > _FUSED_BUDGET_BYTES
    if use_grid and batch_tile is None:
        batch_tile = _choose_batch_tile(n, src, tgt_pad)
    if not use_grid:
        batch_tile = None
    return _forward_padded_impl(x, params["w1"], params["vecs"], params["w2"],
                                use_grid=use_grid, batch_tile=batch_tile)


def style_agnostic_net(x, params, tgt, **kw):
    """Convenience wrapper returning the exact (n, tgt) output (extra slice)."""
    return style_agnostic_forward_padded(x, params, **kw)[: x.shape[0], :tgt]


# -----------------------------------------------------------------------------
# Synthetic parameters & references
# -----------------------------------------------------------------------------
def init_params(key, src_embed_dim, tgt_embed_dim):
    """Deterministic synthetic params (shapes match nn.Linear / BatchNorm1d)."""
    k1, k2, k3, k4 = jax.random.split(key, 4)
    s1 = 1.0 / jnp.sqrt(src_embed_dim)
    w1 = jax.random.uniform(k1, (src_embed_dim, src_embed_dim), jnp.float32, -s1, s1)
    b1 = jax.random.uniform(k2, (1, src_embed_dim), jnp.float32, -s1, s1)
    gamma = jnp.ones((1, src_embed_dim), jnp.float32)
    beta = jnp.zeros((1, src_embed_dim), jnp.float32)
    w2 = jax.random.uniform(k3, (src_embed_dim, tgt_embed_dim), jnp.float32, -s1, s1)
    b2 = jax.random.uniform(k4, (1, tgt_embed_dim), jnp.float32, -s1, s1)
    return w1, b1, gamma, beta, w2, b2


def reference_forward_mixed(x, w1, b1, gamma, beta, w2, b2):
    """Plain-JAX reference mirroring the kernel arithmetic: bf16 MXU operands,
    f32 accumulation, one-pass variance, BN folded to a per-feature affine,
    b1 cancelled by training-mode BN."""
    del b1
    n = x.shape[0]
    h = jnp.dot(x.astype(jnp.bfloat16), w1.astype(jnp.bfloat16),
                preferred_element_type=jnp.float32)
    mean = jnp.sum(h, axis=0, keepdims=True) / n
    var = jnp.sum(h * h, axis=0, keepdims=True) / n - mean * mean
    scale = gamma * jax.lax.rsqrt(var + _BN_EPS)
    shift = beta - mean * scale
    h = jnp.clip(h * scale + shift, -1.0, 1.0)
    out = jnp.dot(h.astype(jnp.bfloat16), w2.astype(jnp.bfloat16),
                  preferred_element_type=jnp.float32) + b2
    return jnp.clip(out, -1.0, 1.0)


def reference_forward_f32(x, w1, b1, gamma, beta, w2, b2):
    """Full-f32 reference of the original PyTorch forward (training-mode BN),
    including b1 (which the kernel drops because BN cancels it)."""
    h = x @ w1 + b1
    mean = jnp.mean(h, axis=0, keepdims=True)
    var = jnp.mean((h - mean) ** 2, axis=0, keepdims=True)
    h = (h - mean) / jnp.sqrt(var + _BN_EPS) * gamma + beta
    h = jnp.clip(h, -1.0, 1.0)
    return jnp.clip(h @ w2 + b2, -1.0, 1.0)


if __name__ == "__main__":
    key = jax.random.PRNGKey(0)
    k_small, k_large = jax.random.split(key)

    # --- Small fused path: batch=8, src=128, tgt=64 (gridless, all-in-VMEM) ---
    N, SRC, TGT = 8, 128, 64
    kx, kp = jax.random.split(k_small)
    x = jax.random.normal(kx, (N, SRC), jnp.float32)
    raw = init_params(kp, SRC, TGT)
    prepared, tgt = prepare_params(*raw)   # one-time preprocessing (hoisted)

    out_pad = jax.block_until_ready(style_agnostic_forward_padded(x, prepared))
    out = out_pad[:N, :tgt]                # consumer-side slice of padded slab
    assert out.shape == (N, TGT), out.shape
    err_mixed = float(jnp.max(jnp.abs(out - reference_forward_mixed(x, *raw))))
    assert err_mixed < 5e-3, err_mixed
    err_f32 = float(jnp.max(jnp.abs(out - reference_forward_f32(x, *raw))))
    assert err_f32 < 1e-1, err_f32

    # --- Batch-gridded two-pass path: batch=300 (not a tile multiple), src=512 ---
    N2, SRC2, TGT2 = 300, 512, 64
    kx2, kp2 = jax.random.split(k_large)
    x2 = jax.random.normal(kx2, (N2, SRC2), jnp.float32)
    raw2 = init_params(kp2, SRC2, TGT2)
    prepared2, tgt2 = prepare_params(*raw2)

    out_pad2 = jax.block_until_ready(
        style_agnostic_forward_padded(x2, prepared2, batch_tile=128, force_grid=True))
    out2 = out_pad2[:N2, :tgt2]
    assert out2.shape == (N2, TGT2), out2.shape
    err_mixed2 = float(jnp.max(jnp.abs(out2 - reference_forward_mixed(x2, *raw2))))
    assert err_mixed2 < 5e-3, err_mixed2
    err_f322 = float(jnp.max(jnp.abs(out2 - reference_forward_f32(x2, *raw2))))
    assert err_f322 < 1e-1, err_f322

    print("KERNEL_OK")
</pallas_src>

<mosaic_0001>
module attributes {stable_mosaic.version = 11 : i64} {
  func.func @_fused_kernel(%arg0: memref<8x128xf32, #tpu.memory_space<vmem>>, %arg1: memref<128x128xbf16, #tpu.memory_space<vmem>>, %arg2: memref<3x128xf32, #tpu.memory_space<vmem>>, %arg3: memref<128x128xbf16, #tpu.memory_space<vmem>>, %arg4: memref<8x128xf32, #tpu.memory_space<vmem>>) attributes {dimension_semantics = [], scalar_prefetch = 0 : i64, scratch_operands = 0 : i64, tpu.core_type = #tpu.core_type<tc>} {
    %c0 = arith.constant 0 : index
    %c0_0 = arith.constant 0 : index
    %0 = vector.load %arg0[%c0, %c0_0] : memref<8x128xf32, #tpu.memory_space<vmem>>, vector<8x128xf32>
    %1 = arith.truncf %0 : vector<8x128xf32> to vector<8x128xbf16>
    %c0_1 = arith.constant 0 : index
    %c0_2 = arith.constant 0 : index
    %2 = vector.load %arg1[%c0_1, %c0_2] : memref<128x128xbf16, #tpu.memory_space<vmem>>, vector<128x128xbf16>
    %cst = arith.constant dense<0.000000e+00> : vector<8x128xf32>
    %3 = tpu.matmul %1, %2, %cst {dimension_numbers = #tpu.dot_dimension_numbers<[1], [0], [0], [1], [0, 0, 1, 1], [], []>} : vector<8x128xbf16>, vector<128x128xbf16>, vector<8x128xf32> -> vector<8x128xf32>
    %cst_3 = arith.constant dense<0.000000e+00> : vector<128xf32>
    %4 = vector.multi_reduction <add>, %3, %cst_3 [0] : vector<8x128xf32> to vector<128xf32>
    %5 = vector.shape_cast %4 : vector<128xf32> to vector<1x128xf32>
    %cst_4 = arith.constant 1.250000e-01 : f32
    %6 = vector.broadcast %cst_4 : f32 to vector<1x128xf32>
    %7 = arith.mulf %5, %6 : vector<1x128xf32>
    %8 = arith.mulf %3, %3 : vector<8x128xf32>
    %cst_5 = arith.constant dense<0.000000e+00> : vector<128xf32>
    %9 = vector.multi_reduction <add>, %8, %cst_5 [0] : vector<8x128xf32> to vector<128xf32>
    %10 = vector.shape_cast %9 : vector<128xf32> to vector<1x128xf32>
    %cst_6 = arith.constant 1.250000e-01 : f32
    %11 = vector.broadcast %cst_6 : f32 to vector<1x128xf32>
    %12 = arith.mulf %10, %11 : vector<1x128xf32>
    %13 = arith.mulf %7, %7 : vector<1x128xf32>
    %14 = arith.subf %12, %13 : vector<1x128xf32>
    %c0_7 = arith.constant 0 : index
    %c0_8 = arith.constant 0 : index
    %15 = vector.load %arg2[%c0_7, %c0_8] : memref<3x128xf32, #tpu.memory_space<vmem>>, vector<1x128xf32>
    %c1 = arith.constant 1 : index
    %c0_9 = arith.constant 0 : index
    %16 = vector.load %arg2[%c1, %c0_9] : memref<3x128xf32, #tpu.memory_space<vmem>>, vector<1x128xf32>
    %cst_10 = arith.constant 9.99999974E-6 : f32
    %17 = vector.broadcast %cst_10 : f32 to vector<1x128xf32>
    %18 = arith.addf %14, %17 : vector<1x128xf32>
    %19 = math.rsqrt %18 : vector<1x128xf32>
    %20 = arith.mulf %15, %19 : vector<1x128xf32>
    %21 = arith.mulf %7, %20 : vector<1x128xf32>
    %22 = arith.subf %16, %21 : vector<1x128xf32>
    %23 = vector.broadcast %20 : vector<1x128xf32> to vector<8x128xf32>
    %24 = arith.mulf %3, %23 : vector<8x128xf32>
    %25 = vector.broadcast %22 : vector<1x128xf32> to vector<8x128xf32>
    %26 = arith.addf %24, %25 : vector<8x128xf32>
    %cst_11 = arith.constant -1.000000e+00 : f32
    %cst_12 = arith.constant 1.000000e+00 : f32
    %27 = vector.broadcast %cst_11 : f32 to vector<8x128xf32>
    %28 = arith.maximumf %27, %26 : vector<8x128xf32>
    %29 = vector.broadcast %cst_12 : f32 to vector<8x128xf32>
    %30 = arith.minimumf %29, %28 : vector<8x128xf32>
    %c2 = arith.constant 2 : index
    %c0_13 = arith.constant 0 : index
    %31 = vector.load %arg2[%c2, %c0_13] : memref<3x128xf32, #tpu.memory_space<vmem>>, vector<1x128xf32>
    %32 = arith.truncf %30 : vector<8x128xf32> to vector<8x128xbf16>
    %c0_14 = arith.constant 0 : index
    %c0_15 = arith.constant 0 : index
    %33 = vector.load %arg3[%c0_14, %c0_15] : memref<128x128xbf16, #tpu.memory_space<vmem>>, vector<128x128xbf16>
    %cst_16 = arith.constant dense<0.000000e+00> : vector<8x128xf32>
    %34 = tpu.matmul %32, %33, %cst_16 {dimension_numbers = #tpu.dot_dimension_numbers<[1], [0], [0], [1], [0, 0, 1, 1], [], []>} : vector<8x128xbf16>, vector<128x128xbf16>, vector<8x128xf32> -> vector<8x128xf32>
    %35 = vector.broadcast %31 : vector<1x128xf32> to vector<8x128xf32>
    %36 = arith.addf %34, %35 : vector<8x128xf32>
    %cst_17 = arith.constant -1.000000e+00 : f32
    %cst_18 = arith.constant 1.000000e+00 : f32
    %37 = vector.broadcast %cst_17 : f32 to vector<8x128xf32>
    %38 = arith.maximumf %37, %36 : vector<8x128xf32>
    %39 = vector.broadcast %cst_18 : f32 to vector<8x128xf32>
    %40 = arith.minimumf %39, %38 : vector<8x128xf32>
    %c0_19 = arith.constant 0 : index
    %c0_20 = arith.constant 0 : index
    %41 = vector.load %arg4[%c0_19, %c0_20] : memref<8x128xf32, #tpu.memory_space<vmem>>, vector<8x128xf32>
    tpu.vector_store %arg4[%c0_19, %c0_20], %40 {strides = array<i32>} : memref<8x128xf32, #tpu.memory_space<vmem>>, vector<8x128xf32>,
    return
  }
}

</mosaic_0001>

<llo_original>
// kernel: _forward_padded_impl.1
$region0: #{_forward_padded_impl.1}
  #allocation0 [shape = 'u32[]', space=smem, size = 0x4, offset = 0x4, fixed_abs, tag = 'smem constant byte address 0x4 - core index']
  #allocation1 [shape = 'u32[72,128]{1,0:T(1,128)}', space=vmem, size = 0x9000, scoped, tag = 'internal scratch']
  %s0 = inlined_call_operand.hbm [shape: f32[8,128], index: 0, kind: input, shape index: {}]
  %s1 = inlined_call_operand.hbm [shape: bf16[128,128], index: 1, kind: input, shape index: {}]
  %s2 = inlined_call_operand.hbm [shape: f32[3,128], index: 2, kind: input, shape index: {}]
  %s3 = inlined_call_operand.hbm [shape: bf16[128,128], index: 3, kind: input, shape index: {}]
  %s4 = inlined_call_operand.hbm [shape: f32[8,128], index: 4, kind: output, shape index: {}]
  %s5 = sld [smem:[#allocation0]]
  $region42: #{_forward_padded_impl.1} parent=0
    _
  %s7 = ssub.s32 1, %s5
  %s8 = scalar_select 0, %s7, %s5
  $region1: #{_forward_padded_impl.1} parent=0
    #allocation2 [shape = 'u8[4096]{0}', space=vmem, size = 0x1000, scoped, tag = 'input window, operand 0, single buffered']
    #allocation3 [shape = 's32[1]{0}', space=sflag, size = 0x4, scoped, tag = 'scoped memory for _forward_padded_impl.1']
    #allocation4 [shape = 's32[1]{0}', space=sflag, size = 0x4, scoped, tag = 'scoped memory for _forward_padded_impl.1']
    #allocation5 [shape = 'u8[32768]{0}', space=vmem, size = 0x8000, scoped, tag = 'input window, operand 1, single buffered']
    #allocation6 [shape = 's32[1]{0}', space=sflag, size = 0x4, scoped, tag = 'scoped memory for _forward_padded_impl.1']
    #allocation7 [shape = 'u8[2048]{0}', space=vmem, size = 0x800, scoped, tag = 'input window, operand 2, single buffered']
    #allocation8 [shape = 'u8[32768]{0}', space=vmem, size = 0x8000, scoped, tag = 'input window, operand 3, single buffered']
    #allocation9 [shape = 's32[1]{0}', space=sflag, size = 0x4, scoped, tag = 'scoped memory for _forward_padded_impl.1']
    #allocation10 [shape = 'u8[4096]{0}', space=vmem, size = 0x1000, scoped, tag = 'output window, operand 0, single buffered']
    %9 = vsyncpa [#allocation3], 0
    %10 = vsyncpa [#allocation6], 0
    %11 = vsyncpa [#allocation9], 0
    %12 = vsyncpa [#allocation4], 0
    // Predicated region
    $region2: #{_forward_padded_impl.1} parent=1 // pred_check
      _
    $region3: #{_forward_padded_impl.1} parent=1 // pred_check_branch
      %14 = sbr.rel (0) target = $region5
    $region4: #{_forward_padded_impl.1} parent=1 // pred_region
      %16 = vsyncadd [#allocation3], 0
      %s18 = sshll.u32 %s0, 4
      %s19 = int_to_ptr.hbm [resolvable:$true] %s18
      %s20 = sshll.u32 [#allocation2], 4
      %s21 = int_to_ptr.vmem [resolvable:$true] %s20
      %23 = dma.hbm_to_vmem [thread:$0]  %s19, 128, %s21, [#allocation3]
    $region5: #{_forward_padded_impl.1} parent=1 // pred_fallthru
      _
    // Predicated region
    $region6: #{_forward_padded_impl.1} parent=1 // pred_check
      _
    $region7: #{_forward_padded_impl.1} parent=1 // pred_check_branch
      %25 = sbr.rel (0) target = $region9
    $region8: #{_forward_padded_impl.1} parent=1 // pred_region
      %27 = vsyncadd [#allocation6], 0
      %s28 = sshll.u32 %s1, 4
      %s29 = int_to_ptr.hbm [resolvable:$true] %s28
      %s30 = sshll.u32 [#allocation5], 4
      %s31 = int_to_ptr.vmem [resolvable:$true] %s30
      %36 = dma.hbm_to_vmem [thread:$0]  %s29, 1024, %s31, [#allocation6], 64, 64, 4
    $region9: #{_forward_padded_impl.1} parent=1 // pred_fallthru
      _
    // Predicated region
    $region10: #{_forward_padded_impl.1} parent=1 // pred_check
      _
    $region11: #{_forward_padded_impl.1} parent=1 // pred_check_branch
      %38 = sbr.rel (0) target = $region13
    $region12: #{_forward_padded_impl.1} parent=1 // pred_region
      %40 = vsyncadd [#allocation6], 0
      %s42 = sshll.u32 %s2, 4
      %s43 = int_to_ptr.hbm [resolvable:$true] %s42
      %s44 = sshll.u32 [#allocation7], 4
      %s45 = int_to_ptr.vmem [resolvable:$true] %s44
      %47 = dma.hbm_to_vmem [thread:$0]  %s43, 64, %s45, [#allocation6]
    $region13: #{_forward_padded_impl.1} parent=1 // pred_fallthru
      _
    // Predicated region
    $region14: #{_forward_padded_impl.1} parent=1 // pred_check
      _
    $region15: #{_forward_padded_impl.1} parent=1 // pred_check_branch
      %49 = sbr.rel (0) target = $region17
    $region16: #{_forward_padded_impl.1} parent=1 // pred_region
      %51 = vsyncadd [#allocation9], 0
      %s52 = sshll.u32 %s3, 4
      %s53 = int_to_ptr.hbm [resolvable:$true] %s52
      %s54 = sshll.u32 [#allocation8], 4
      %s55 = int_to_ptr.vmem [resolvable:$true] %s54
      %60 = dma.hbm_to_vmem [thread:$0]  %s53, 1024, %s55, [#allocation9], 64, 64, 4
    $region17: #{_forward_padded_impl.1} parent=1 // pred_fallthru
      _
    // Predicated region
    $region18: #{_forward_padded_impl.1} parent=1 // pred_check
      _
    $region19: #{_forward_padded_impl.1} parent=1 // pred_check_branch
      %62 = sbr.rel (0) target = $region21
    $region20: #{_forward_padded_impl.1} parent=1 // pred_region
      %64 = dma.done [#allocation3], 128
    $region21: #{_forward_padded_impl.1} parent=1 // pred_fallthru
      _
    // Predicated region
    $region22: #{_forward_padded_impl.1} parent=1 // pred_check
      _
    $region23: #{_forward_padded_impl.1} parent=1 // pred_check_branch
      %66 = sbr.rel (0) target = $region25
    $region24: #{_forward_padded_impl.1} parent=1 // pred_region
      %68 = dma.done [#allocation6], 1024
    $region25: #{_forward_padded_impl.1} parent=1 // pred_fallthru
      _
    // Predicated region
    $region26: #{_forward_padded_impl.1} parent=1 // pred_check
      _
    $region27: #{_forward_padded_impl.1} parent=1 // pred_check_branch
      %70 = sbr.rel (0) target = $region29
    $region28: #{_forward_padded_impl.1} parent=1 // pred_region
      %72 = dma.done [#allocation6], 64
    $region29: #{_forward_padded_impl.1} parent=1 // pred_fallthru
      _
    // Predicated region
    $region30: #{_forward_padded_impl.1} parent=1 // pred_check
      _
    $region31: #{_forward_padded_impl.1} parent=1 // pred_check_branch
      %74 = sbr.rel (0) target = $region33
    $region32: #{_forward_padded_impl.1} parent=1 // pred_region
      %76 = dma.done [#allocation9], 1024
    $region33: #{_forward_padded_impl.1} parent=1 // pred_fallthru
      _
    %v77 = vld [vmem:[#allocation2] sm:$0xff]
    %v78 = vpack.c.bf16 %v77, %v77
    %v79 = vld [vmem:[#allocation5] sm:$0xf]
    %v80 = vld [vmem:[#allocation5 + $0x4] sm:$0xf]
    %v81 = vld [vmem:[#allocation5 + $0x8] sm:$0xf]
    %v82 = vld [vmem:[#allocation5 + $0xc] sm:$0xf]
    %v83 = vld [vmem:[#allocation5 + $0x10] sm:$0xf]
    %v84 = vld [vmem:[#allocation5 + $0x14] sm:$0xf]
    %v85 = vld [vmem:[#allocation5 + $0x18] sm:$0xf]
    %v86 = vld [vmem:[#allocation5 + $0x1c] sm:$0xf]
    %v87 = vld [vmem:[#allocation5 + $0x20] sm:$0xf]
    %v88 = vld [vmem:[#allocation5 + $0x24] sm:$0xf]
    %v89 = vld [vmem:[#allocation5 + $0x28] sm:$0xf]
    %v90 = vld [vmem:[#allocation5 + $0x2c] sm:$0xf]
    %v91 = vld [vmem:[#allocation5 + $0x30] sm:$0xf]
    %v92 = vld [vmem:[#allocation5 + $0x34] sm:$0xf]
    %v93 = vld [vmem:[#allocation5 + $0x38] sm:$0xf]
    %v94 = vld [vmem:[#allocation5 + $0x3c] sm:$0xf]
    %v111 = vunpack.c.l.b16 %v79
    %v112 = vunpack.c.l.b16 %v80
    %v113 = vunpack.c.l.b16 %v81
    %v114 = vunpack.c.l.b16 %v82
    %v115 = vunpack.c.l.b16 %v83
    %v116 = vunpack.c.l.b16 %v84
    %v117 = vunpack.c.l.b16 %v85
    %v118 = vunpack.c.l.b16 %v86
    %v119 = vunpack.c.l.b16 %v87
    %v120 = vunpack.c.l.b16 %v88
    %v121 = vunpack.c.l.b16 %v89
    %v122 = vunpack.c.l.b16 %v90
    %v123 = vunpack.c.l.b16 %v91
    %v124 = vunpack.c.l.b16 %v92
    %v125 = vunpack.c.l.b16 %v93
    %v126 = vunpack.c.l.b16 %v94
    %v127 = vpack.c.b16 %v112, %v111
    %v128 = vpack.c.b16 %v114, %v113
    %v129 = vpack.c.b16 %v116, %v115
    %v130 = vpack.c.b16 %v118, %v117
    %v131 = vpack.c.b16 %v120, %v119
    %v132 = vpack.c.b16 %v122, %v121
    %v133 = vpack.c.b16 %v124, %v123
    %v134 = vpack.c.b16 %v126, %v125
    %143 = vmatpush.bf16.msra.mxu0 %v134
    %144 = vmatpush.bf16.msra.mxu0 %v133
    %145 = vmatpush.bf16.msra.mxu0 %v132
    %146 = vmatpush.bf16.msra.mxu0 %v131
    %147 = vmatpush.bf16.msra.mxu0 %v130
    %148 = vmatpush.bf16.msra.mxu0 %v129
    %149 = vmatpush.bf16.msra.mxu0 %v128
    %150 = vmatpush.bf16.msra.mxu0 %v127
    %151 = vmatmul.bf16.gmra.mxu0 %v78
    %v152 = vpop.f32.mrf.mxu0
    %v153 = vadd.f32 0.0, %v152
    %v154 = vpop.f32.mrf.mxu0
    %155 = vdwg.mxu0
    %v156 = vrot.slane %v153, 4
    %v157 = vadd.f32 %v153, %v156
    %v158 = vrot.slane %v157, 2
    %v159 = vadd.f32 %v157, %v158
    %v160 = vrot.slane %v159, 1
    %v161 = vadd.f32 %v159, %v160
    %v162 = vmul.f32 %v161, 0.125
    %v163 = vmul.f32 %v153, %v153
    %v164 = vrot.slane %v163, 4
    %v165 = vadd.f32 %v163, %v164
    %v166 = vrot.slane %v165, 2
    %v167 = vadd.f32 %v165, %v166
    %v168 = vrot.slane %v167, 1
    %v169 = vadd.f32 %v167, %v168
    %v170 = vmul.f32 %v169, 0.125
    %v171 = vmul.f32 %v162, %v162
    %v172 = vsub.f32 %v170, %v171
    %v173 = vld [vmem:[#allocation7] sm:$0x1]
    %v174 = vld [vmem:[#allocation7 + $0x1] sm:$0x1]
    %v175 = vadd.f32 %v172, 1e-05
    %v176 = vrsqrt.pop %v175
    %v177 = vmul.f32 %v176, %v175
    %v178 = vmul.f32 %v177, %v176
    %v179 = vmul.f32 0.5, %v178
    %v180 = vsub.f32 1.5, %v179
    %v181 = vmul.f32 %v176, %v180
    %vm182 = vweird.f32 %v175
    %vm183 = vweird.f32 %v176
    %vm184 = vmor %vm182, %vm183
    %v185 = vsel %vm184, %v176, %v181
    %v186 = vmul.f32 %v173, %v185
    %v187 = vmul.f32 %v162, %v186
    %v188 = vsub.f32 %v174, %v187
    %v189 = vperm.slane %v186, 0
    %v190 = vmul.f32 %v153, %v189
    %v191 = vperm.slane %v188, 0
    %v192 = vadd.f32 %v190, %v191
    %v193 = vmax.f32 %v192, -1.0
    %v194 = vmin.f32 %v193, 1.0
    %v195 = vld [vmem:[#allocation7 + $0x2] sm:$0x1]
    %v196 = vpack.c.bf16 %v194, %v194
    %v197 = vld [vmem:[#allocation8] sm:$0xf]
    %v198 = vld [vmem:[#allocation8 + $0x4] sm:$0xf]
    %v199 = vld [vmem:[#allocation8 + $0x8] sm:$0xf]
    %v200 = vld [vmem:[#allocation8 + $0xc] sm:$0xf]
    %v201 = vld [vmem:[#allocation8 + $0x10] sm:$0xf]
    %v202 = vld [vmem:[#allocation8 + $0x14] sm:$0xf]
    %v203 = vld [vmem:[#allocation8 + $0x18] sm:$0xf]
    %v204 = vld [vmem:[#allocation8 + $0x1c] sm:$0xf]
    %v205 = vld [vmem:[#allocation8 + $0x20] sm:$0xf]
    %v206 = vld [vmem:[#allocation8 + $0x24] sm:$0xf]
    %v207 = vld [vmem:[#allocation8 + $0x28] sm:$0xf]
    %v208 = vld [vmem:[#allocation8 + $0x2c] sm:$0xf]
    %v209 = vld [vmem:[#allocation8 + $0x30] sm:$0xf]
    %v210 = vld [vmem:[#allocation8 + $0x34] sm:$0xf]
    %v211 = vld [vmem:[#allocation8 + $0x38] sm:$0xf]
    %v212 = vld [vmem:[#allocation8 + $0x3c] sm:$0xf]
    %v213 = vperm.slane %v195, 0
    %v230 = vunpack.c.l.b16 %v197
    %v231 = vunpack.c.l.b16 %v198
    %v232 = vunpack.c.l.b16 %v199
    %v233 = vunpack.c.l.b16 %v200
    %v234 = vunpack.c.l.b16 %v201
    %v235 = vunpack.c.l.b16 %v202
    %v236 = vunpack.c.l.b16 %v203
    %v237 = vunpack.c.l.b16 %v204
    %v238 = vunpack.c.l.b16 %v205
    %v239 = vunpack.c.l.b16 %v206
    %v240 = vunpack.c.l.b16 %v207
    %v241 = vunpack.c.l.b16 %v208
    %v242 = vunpack.c.l.b16 %v209
    %v243 = vunpack.c.l.b16 %v210
    %v244 = vunpack.c.l.b16 %v211
    %v245 = vunpack.c.l.b16 %v212
    %v246 = vpack.c.b16 %v231, %v230
    %v247 = vpack.c.b16 %v233, %v232
    %v248 = vpack.c.b16 %v235, %v234
    %v249 = vpack.c.b16 %v237, %v236
    %v250 = vpack.c.b16 %v239, %v238
    %v251 = vpack.c.b16 %v241, %v240
    %v252 = vpack.c.b16 %v243, %v242
    %v253 = vpack.c.b16 %v245, %v244
    %262 = vmatpush.bf16.msra.mxu0 %v253
    %263 = vmatpush.bf16.msra.mxu0 %v252
    %264 = vmatpush.bf16.msra.mxu0 %v251
    %265 = vmatpush.bf16.msra.mxu0 %v250
    %266 = vmatpush.bf16.msra.mxu0 %v249
    %267 = vmatpush.bf16.msra.mxu0 %v248
    %268 = vmatpush.bf16.msra.mxu0 %v247
    %269 = vmatpush.bf16.msra.mxu0 %v246
    %270 = vmatmul.bf16.gmra.mxu0 %v196
    %v271 = vpop.f32.mrf.mxu0
    %v272 = vadd.f32 %v213, %v271
    %v273 = vpop.f32.mrf.mxu0
    %274 = vdwg.mxu0
    %v275 = vmax.f32 %v272, -1.0
    %v276 = vmin.f32 %v275, 1.0
    %277 = vst [vmem:[#allocation10] sm:$0xff] %v276
    // Predicated region
    $region34: #{_forward_padded_impl.1} parent=1 // pred_check
      _
    $region35: #{_forward_padded_impl.1} parent=1 // pred_check_branch
      %279 = sbr.rel (0) target = $region37
    $region36: #{_forward_padded_impl.1} parent=1 // pred_region
      %281 = vsyncadd [#allocation4], 0
      %s283 = sshll.u32 [#allocation10], 4
      %s284 = int_to_ptr.vmem [resolvable:$true] %s283
      %s285 = sshll.u32 %s4, 4
      %s286 = int_to_ptr.hbm [resolvable:$true] %s285
      %288 = dma.vmem_to_hbm [thread:$0]  %s284, 128, %s286, [#allocation4]
    $region37: #{_forward_padded_impl.1} parent=1 // pred_fallthru
      _
    // Predicated region
    $region38: #{_forward_padded_impl.1} parent=1 // pred_check
      _
    $region39: #{_forward_padded_impl.1} parent=1 // pred_check_branch
      %290 = sbr.rel (0) target = $region41
    $region40: #{_forward_padded_impl.1} parent=1 // pred_region
      %292 = dma.done [#allocation4], 128
    $region41: #{_forward_padded_impl.1} parent=1 // pred_fallthru
      _
    %293 = vsyncpa [#allocation3], 1
    %294 = vsyncpa [#allocation6], 1
    %295 = vsyncpa [#allocation9], 1
    %296 = vsyncpa [#allocation4], 1

</llo_original>
